<compile_context>
chip_gen: v5e
topology: v5e:2x2
jax: 0.10.0
libtpu: 0.0.40
codegen_flags: <defaults>
</compile_context>

<pallas_src>
import jax
import jax.numpy as jnp
from jax.experimental import pallas as pl
from jax.experimental.pallas import tpu as pltpu


_CHUNK = 128                 # one vreg of lanes per chunk
_MAX_UNROLLED_CHUNKS = 32    # beyond this, fall back to the full-width body


def _irrep_linreg_kernel(xr_ref, xi_ref, wr_ref, wi_ref, o_ref):
    tb, n_in = xr_ref.shape
    n_chunks = n_in // _CHUNK

    if n_in % _CHUNK == 0 and 1 < n_chunks <= _MAX_UNROLLED_CHUNKS:
        # Chunked accumulation: per-chunk elementwise temporaries are
        # (tb, 128) instead of (tb, n_in), so Mosaic never has to stream a
        # multi-MiB product temp through VMEM (spill/vst guard, matters most
        # on v5e's single vst slot and at tb >= 1024). Static Python loop ->
        # fully static, lane-aligned slices. One XLU lane reduce per output.
        acc_r = jnp.zeros((tb, _CHUNK), jnp.float32)
        acc_i = jnp.zeros((tb, _CHUNK), jnp.float32)
        for c in range(n_chunks):
            sl = pl.ds(c * _CHUNK, _CHUNK)
            xr = xr_ref[:, sl]            # (tb, 128)
            xi = xi_ref[:, sl]            # (tb, 128)
            wr = wr_ref[:, sl]            # (1, 128), broadcasts over rows
            wi = wi_ref[:, sl]            # (1, 128)
            acc_r = acc_r + (xr * wr - xi * wi)
            acc_i = acc_i + (xr * wi + xi * wr)
        out_r = jnp.sum(acc_r, axis=-1, keepdims=True)   # (tb, 1)
        out_i = jnp.sum(acc_i, axis=-1, keepdims=True)   # (tb, 1)
    else:
        # Fallback (n_in not a multiple of 128, or tiny / very large n_in).
        xr = xr_ref[...]
        xi = xi_ref[...]
        wr = wr_ref[...]
        wi = wi_ref[...]
        out_r = jnp.sum(xr * wr - xi * wi, axis=-1, keepdims=True)
        out_i = jnp.sum(xr * wi + xi * wr, axis=-1, keepdims=True)

    # Two direct (masked) column stores instead of a concatenate (the concat
    # of two lane-0 columns would add a cross-lane shuffle before the store).
    # NOTE: rows past B in the last partial tile hold padding; the reductions
    # above are row-local so valid rows are unaffected, and Pallas masks the
    # out-of-range rows on writeback. Do not turn this into a cross-row op.
    o_ref[:, 0:1] = out_r.astype(o_ref.dtype)
    o_ref[:, 1:2] = out_i.astype(o_ref.dtype)


def _round_up(x, m):
    return ((x + m - 1) // m) * m


def _default_tb():
    """Generation-aware batch-tile default (amortize per-grid-step overhead)."""
    kind = ""
    try:
        kind = jax.devices()[0].device_kind.lower()
    except Exception:
        pass
    if "v7" in kind or "tpu7" in kind:
        # v7x: ~3.2 TB/s HBM makes the ~0.35us step overhead dominant at small
        # tiles; 2048 keeps double-buffered inputs at 16 MiB (n_in=512).
        return 2048
    # v6e / v5e sweet spot: fits every scoped-VMEM default with headroom.
    return 1024


def irrep_linreg_forward(xr, xi, wr, wi, *, tb=None, min_pallas_batch=512):
    """Pallas implementation of IrrepLinreg.forward (cmm).

    xr, xi: (B, n_in) float32; wr, wi: (n_in, 1) float32.
    Returns (out_r, out_i), each (B, 1) float32.
    """
    B, n_in = xr.shape
    assert xi.shape == (B, n_in)
    assert wr.shape == (n_in, 1) and wi.shape == (n_in, 1)

    # Tiny-batch fallback: the fixed pallas_call / grid-step cost dominates
    # and XLA's fused matvec matches or beats the kernel at this size.
    if B < min_pallas_batch:
        out_r = xr @ wr - xi @ wi
        out_i = xr @ wi + xi @ wr
        return out_r, out_i

    # Lane-major weights: (n_in, 1) is sublane-major and pads to ~n_in/8 vregs
    # with only lane 0 populated; (1, n_in) occupies ~n_in/128 vregs and stays
    # resident via the constant index_map below (DMA'd once).
    wr_row = wr.reshape(1, n_in)
    wi_row = wi.reshape(1, n_in)

    if tb is None:
        tb = _default_tb()

    # Cap tb so double-buffered inputs (2 arrays x 2 buffers x tb x n_in x 4B)
    # stay <= 16 MiB: safe under the 32 MiB vmem limit requested below and
    # well inside v7x's 64 MiB physical VMEM.
    input_budget = 16 << 20
    tb_cap = max(8, ((input_budget // (16 * n_in)) // 8) * 8)
    tb = min(tb, tb_cap)

    # Guarantee >= 2 grid steps for mid-size batches so the "parallel" batch
    # axis can be sharded across both of v7x's TensorCores (no-op on 1-TC
    # chips; they just see 2+ sequential steps).
    if B >= 16:
        tb = min(tb, _round_up(pl.cdiv(B, 2), 8))

    # Sublane alignment: when the block does not cover the whole batch, its
    # second-to-last dim must be a multiple of 8 ((8,128) BlockSpec rule).
    if B >= 8:
        tb = max(8, (min(tb, B) // 8) * 8)
    else:
        tb = B  # block == full array dims -> exempt from the (8,128) rule

    grid = (pl.cdiv(B, tb),)

    x_spec = pl.BlockSpec((tb, n_in), lambda i: (i, 0))
    w_spec = pl.BlockSpec((1, n_in), lambda i: (0, 0))   # constant -> resident
    o_spec = pl.BlockSpec((tb, 2), lambda i: (i, 0))

    cost = pl.CostEstimate(
        flops=8 * B * n_in,
        transcendentals=0,
        bytes_accessed=8 * B * n_in + 8 * n_in + 8 * B,
    )

    fused = pl.pallas_call(
        _irrep_linreg_kernel,
        out_shape=jax.ShapeDtypeStruct((B, 2), jnp.float32),
        grid_spec=pltpu.PrefetchScalarGridSpec(
            num_scalar_prefetch=0,
            grid=grid,
            in_specs=[x_spec, x_spec, w_spec, w_spec],
            out_specs=o_spec,
        ),
        compiler_params=pltpu.CompilerParams(
            dimension_semantics=("parallel",),   # v7x: shard batch over 2 TCs
            vmem_limit_bytes=32 << 20,           # headroom for tb up to 2048
        ),
        cost_estimate=cost,
    )(xr, xi, wr_row, wi_row)

    return fused[:, 0:1], fused[:, 1:2]


def _reference(xr, xi, wr, wi):
    return xr @ wr - xi @ wi, xr @ wi + xi @ wr


if __name__ == "__main__":
    key = jax.random.PRNGKey(0)
    k_xr, k_xi, k_wr, k_wi, k_xr2, k_xi2 = jax.random.split(key, 6)

    n_in = 512
    # Mimic IrrepLinreg.normal_init (N(0, 0.01)); the torch __init__ zeroes
    # the weights, but nontrivial values exercise the kernel meaningfully.
    wr = 0.01 * jax.random.normal(k_wr, (n_in, 1), dtype=jnp.float32)
    wi = 0.01 * jax.random.normal(k_wi, (n_in, 1), dtype=jnp.float32)

    # Case 1: small batch, force the Pallas path (single grid step).
    B1 = 16
    xr1 = jax.random.normal(k_xr, (B1, n_in), dtype=jnp.float32)
    xi1 = jax.random.normal(k_xi, (B1, n_in), dtype=jnp.float32)
    out_r1, out_i1 = irrep_linreg_forward(xr1, xi1, wr, wi, min_pallas_batch=0)
    jax.block_until_ready((out_r1, out_i1))
    ref_r1, ref_i1 = _reference(xr1, xi1, wr, wi)
    assert out_r1.shape == (B1, 1) and out_i1.shape == (B1, 1)
    assert jnp.allclose(out_r1, ref_r1, atol=1e-4, rtol=1e-4)
    assert jnp.allclose(out_i1, ref_i1, atol=1e-4, rtol=1e-4)

    # Case 2: non-divisible batch -> 2 grid steps with a masked partial tile
    # (also exercises the >=2-step split used for v7x megacore).
    B2 = 20
    xr2 = jax.random.normal(k_xr2, (B2, n_in), dtype=jnp.float32)
    xi2 = jax.random.normal(k_xi2, (B2, n_in), dtype=jnp.float32)
    out_r2, out_i2 = irrep_linreg_forward(xr2, xi2, wr, wi, min_pallas_batch=0)
    jax.block_until_ready((out_r2, out_i2))
    ref_r2, ref_i2 = _reference(xr2, xi2, wr, wi)
    assert jnp.allclose(out_r2, ref_r2, atol=1e-4, rtol=1e-4)
    assert jnp.allclose(out_i2, ref_i2, atol=1e-4, rtol=1e-4)

    # Case 3: default tiny-batch fallback path (plain fused XLA matvec).
    out_r3, out_i3 = irrep_linreg_forward(xr1, xi1, wr, wi)
    jax.block_until_ready((out_r3, out_i3))
    assert jnp.allclose(out_r3, ref_r1, atol=1e-4, rtol=1e-4)
    assert jnp.allclose(out_i3, ref_i1, atol=1e-4, rtol=1e-4)

    print("KERNEL_OK")
</pallas_src>

<mosaic_0001>
module attributes {stable_mosaic.version = 11 : i64} {
  func.func @_irrep_linreg_kernel(%arg0: i32, %arg1: memref<8x512xf32, #tpu.memory_space<vmem>>, %arg2: memref<8x512xf32, #tpu.memory_space<vmem>>, %arg3: memref<1x512xf32, #tpu.memory_space<vmem>>, %arg4: memref<1x512xf32, #tpu.memory_space<vmem>>, %arg5: memref<8x2xf32, #tpu.memory_space<vmem>>) attributes {dimension_semantics = [#tpu.dimension_semantics<parallel>], iteration_bounds = array<i64: 2>, scalar_prefetch = 0 : i64, scratch_operands = 0 : i64, tpu.core_type = #tpu.core_type<tc>, window_params = [{transform_indices = @transform_0, window_bounds = array<i64: 8, 512>}, {transform_indices = @transform_1, window_bounds = array<i64: 8, 512>}, {pipeline_mode = #tpu.pipeline_mode<synchronous>, transform_indices = @transform_2, window_bounds = array<i64: 1, 512>}, {pipeline_mode = #tpu.pipeline_mode<synchronous>, transform_indices = @transform_3, window_bounds = array<i64: 1, 512>}, {transform_indices = @transform_4, window_bounds = array<i64: 8, 2>}]} {
    %cst = arith.constant 0.000000e+00 : f32
    %0 = vector.broadcast %cst : f32 to vector<8x128xf32>
    %cst_0 = arith.constant 0.000000e+00 : f32
    %1 = vector.broadcast %cst_0 : f32 to vector<8x128xf32>
    %c0 = arith.constant 0 : index
    %c0_1 = arith.constant 0 : index
    %2 = vector.load %arg1[%c0, %c0_1] : memref<8x512xf32, #tpu.memory_space<vmem>>, vector<8x128xf32>
    %c0_2 = arith.constant 0 : index
    %c0_3 = arith.constant 0 : index
    %3 = vector.load %arg2[%c0_2, %c0_3] : memref<8x512xf32, #tpu.memory_space<vmem>>, vector<8x128xf32>
    %c0_4 = arith.constant 0 : index
    %c0_5 = arith.constant 0 : index
    %4 = vector.load %arg3[%c0_4, %c0_5] : memref<1x512xf32, #tpu.memory_space<vmem>>, vector<1x128xf32>
    %c0_6 = arith.constant 0 : index
    %c0_7 = arith.constant 0 : index
    %5 = vector.load %arg4[%c0_6, %c0_7] : memref<1x512xf32, #tpu.memory_space<vmem>>, vector<1x128xf32>
    %6 = vector.broadcast %4 : vector<1x128xf32> to vector<8x128xf32>
    %7 = arith.mulf %2, %6 : vector<8x128xf32>
    %8 = vector.broadcast %5 : vector<1x128xf32> to vector<8x128xf32>
    %9 = arith.mulf %3, %8 : vector<8x128xf32>
    %10 = arith.subf %7, %9 : vector<8x128xf32>
    %11 = arith.addf %0, %10 : vector<8x128xf32>
    %12 = vector.broadcast %5 : vector<1x128xf32> to vector<8x128xf32>
    %13 = arith.mulf %2, %12 : vector<8x128xf32>
    %14 = vector.broadcast %4 : vector<1x128xf32> to vector<8x128xf32>
    %15 = arith.mulf %3, %14 : vector<8x128xf32>
    %16 = arith.addf %13, %15 : vector<8x128xf32>
    %17 = arith.addf %1, %16 : vector<8x128xf32>
    %c0_8 = arith.constant 0 : index
    %c128 = arith.constant 128 : index
    %18 = vector.load %arg1[%c0_8, %c128] : memref<8x512xf32, #tpu.memory_space<vmem>>, vector<8x128xf32>
    %c0_9 = arith.constant 0 : index
    %c128_10 = arith.constant 128 : index
    %19 = vector.load %arg2[%c0_9, %c128_10] : memref<8x512xf32, #tpu.memory_space<vmem>>, vector<8x128xf32>
    %c0_11 = arith.constant 0 : index
    %c128_12 = arith.constant 128 : index
    %20 = vector.load %arg3[%c0_11, %c128_12] : memref<1x512xf32, #tpu.memory_space<vmem>>, vector<1x128xf32>
    %c0_13 = arith.constant 0 : index
    %c128_14 = arith.constant 128 : index
    %21 = vector.load %arg4[%c0_13, %c128_14] : memref<1x512xf32, #tpu.memory_space<vmem>>, vector<1x128xf32>
    %22 = vector.broadcast %20 : vector<1x128xf32> to vector<8x128xf32>
    %23 = arith.mulf %18, %22 : vector<8x128xf32>
    %24 = vector.broadcast %21 : vector<1x128xf32> to vector<8x128xf32>
    %25 = arith.mulf %19, %24 : vector<8x128xf32>
    %26 = arith.subf %23, %25 : vector<8x128xf32>
    %27 = arith.addf %11, %26 : vector<8x128xf32>
    %28 = vector.broadcast %21 : vector<1x128xf32> to vector<8x128xf32>
    %29 = arith.mulf %18, %28 : vector<8x128xf32>
    %30 = vector.broadcast %20 : vector<1x128xf32> to vector<8x128xf32>
    %31 = arith.mulf %19, %30 : vector<8x128xf32>
    %32 = arith.addf %29, %31 : vector<8x128xf32>
    %33 = arith.addf %17, %32 : vector<8x128xf32>
    %c0_15 = arith.constant 0 : index
    %c256 = arith.constant 256 : index
    %34 = vector.load %arg1[%c0_15, %c256] : memref<8x512xf32, #tpu.memory_space<vmem>>, vector<8x128xf32>
    %c0_16 = arith.constant 0 : index
    %c256_17 = arith.constant 256 : index
    %35 = vector.load %arg2[%c0_16, %c256_17] : memref<8x512xf32, #tpu.memory_space<vmem>>, vector<8x128xf32>
    %c0_18 = arith.constant 0 : index
    %c256_19 = arith.constant 256 : index
    %36 = vector.load %arg3[%c0_18, %c256_19] : memref<1x512xf32, #tpu.memory_space<vmem>>, vector<1x128xf32>
    %c0_20 = arith.constant 0 : index
    %c256_21 = arith.constant 256 : index
    %37 = vector.load %arg4[%c0_20, %c256_21] : memref<1x512xf32, #tpu.memory_space<vmem>>, vector<1x128xf32>
    %38 = vector.broadcast %36 : vector<1x128xf32> to vector<8x128xf32>
    %39 = arith.mulf %34, %38 : vector<8x128xf32>
    %40 = vector.broadcast %37 : vector<1x128xf32> to vector<8x128xf32>
    %41 = arith.mulf %35, %40 : vector<8x128xf32>
    %42 = arith.subf %39, %41 : vector<8x128xf32>
    %43 = arith.addf %27, %42 : vector<8x128xf32>
    %44 = vector.broadcast %37 : vector<1x128xf32> to vector<8x128xf32>
    %45 = arith.mulf %34, %44 : vector<8x128xf32>
    %46 = vector.broadcast %36 : vector<1x128xf32> to vector<8x128xf32>
    %47 = arith.mulf %35, %46 : vector<8x128xf32>
    %48 = arith.addf %45, %47 : vector<8x128xf32>
    %49 = arith.addf %33, %48 : vector<8x128xf32>
    %c0_22 = arith.constant 0 : index
    %c384 = arith.constant 384 : index
    %50 = vector.load %arg1[%c0_22, %c384] : memref<8x512xf32, #tpu.memory_space<vmem>>, vector<8x128xf32>
    %c0_23 = arith.constant 0 : index
    %c384_24 = arith.constant 384 : index
    %51 = vector.load %arg2[%c0_23, %c384_24] : memref<8x512xf32, #tpu.memory_space<vmem>>, vector<8x128xf32>
    %c0_25 = arith.constant 0 : index
    %c384_26 = arith.constant 384 : index
    %52 = vector.load %arg3[%c0_25, %c384_26] : memref<1x512xf32, #tpu.memory_space<vmem>>, vector<1x128xf32>
    %c0_27 = arith.constant 0 : index
    %c384_28 = arith.constant 384 : index
    %53 = vector.load %arg4[%c0_27, %c384_28] : memref<1x512xf32, #tpu.memory_space<vmem>>, vector<1x128xf32>
    %54 = vector.broadcast %52 : vector<1x128xf32> to vector<8x128xf32>
    %55 = arith.mulf %50, %54 : vector<8x128xf32>
    %56 = vector.broadcast %53 : vector<1x128xf32> to vector<8x128xf32>
    %57 = arith.mulf %51, %56 : vector<8x128xf32>
    %58 = arith.subf %55, %57 : vector<8x128xf32>
    %59 = arith.addf %43, %58 : vector<8x128xf32>
    %60 = vector.broadcast %53 : vector<1x128xf32> to vector<8x128xf32>
    %61 = arith.mulf %50, %60 : vector<8x128xf32>
    %62 = vector.broadcast %52 : vector<1x128xf32> to vector<8x128xf32>
    %63 = arith.mulf %51, %62 : vector<8x128xf32>
    %64 = arith.addf %61, %63 : vector<8x128xf32>
    %65 = arith.addf %49, %64 : vector<8x128xf32>
    %cst_29 = arith.constant dense<0.000000e+00> : vector<8xf32>
    %66 = vector.multi_reduction <add>, %59, %cst_29 [1] : vector<8x128xf32> to vector<8xf32>
    %67 = vector.shape_cast %66 : vector<8xf32> to vector<8x1xf32>
    %cst_30 = arith.constant dense<0.000000e+00> : vector<8xf32>
    %68 = vector.multi_reduction <add>, %65, %cst_30 [1] : vector<8x128xf32> to vector<8xf32>
    %69 = vector.shape_cast %68 : vector<8xf32> to vector<8x1xf32>
    %c0_31 = arith.constant 0 : index
    %c0_32 = arith.constant 0 : index
    %70 = vector.load %arg5[%c0_31, %c0_32] : memref<8x2xf32, #tpu.memory_space<vmem>>, vector<8x1xf32>
    tpu.vector_store %arg5[%c0_31, %c0_32], %67 {strides = array<i32>} : memref<8x2xf32, #tpu.memory_space<vmem>>, vector<8x1xf32>,
    %c0_33 = arith.constant 0 : index
    %c1 = arith.constant 1 : index
    %71 = vector.load %arg5[%c0_33, %c1] : memref<8x2xf32, #tpu.memory_space<vmem>>, vector<8x1xf32>
    tpu.vector_store %arg5[%c0_33, %c1], %69 {strides = array<i32>} : memref<8x2xf32, #tpu.memory_space<vmem>>, vector<8x1xf32>,
    return
  }
  func.func @transform_0(%arg0: i32) -> (i32, i32) {
    %c0_i32 = arith.constant 0 : i32
    %c0_i32_0 = arith.constant 0 : i32
    return %arg0, %c0_i32 : i32, i32
  }
  func.func @transform_1(%arg0: i32) -> (i32, i32) {
    %c0_i32 = arith.constant 0 : i32
    %c0_i32_0 = arith.constant 0 : i32
    return %arg0, %c0_i32 : i32, i32
  }
  func.func @transform_2(%arg0: i32) -> (i32, i32) {
    %c0_i32 = arith.constant 0 : i32
    %c0_i32_0 = arith.constant 0 : i32
    %c0_i32_1 = arith.constant 0 : i32
    return %c0_i32, %c0_i32_0 : i32, i32
  }
  func.func @transform_3(%arg0: i32) -> (i32, i32) {
    %c0_i32 = arith.constant 0 : i32
    %c0_i32_0 = arith.constant 0 : i32
    %c0_i32_1 = arith.constant 0 : i32
    return %c0_i32, %c0_i32_0 : i32, i32
  }
  func.func @transform_4(%arg0: i32) -> (i32, i32) {
    %c0_i32 = arith.constant 0 : i32
    %c0_i32_0 = arith.constant 0 : i32
    return %arg0, %c0_i32 : i32, i32
  }
}

</mosaic_0001>

<llo_original>
// kernel: tpu_custom_call.1
$region0: #{tpu_custom_call.1}
  #allocation0 [shape = 'u32[]', space=smem, size = 0x4, offset = 0x4, fixed_abs, tag = 'smem constant byte address 0x4 - core index']
  #allocation1 [shape = 'u32[72,128]{1,0:T(1,128)}', space=vmem, size = 0x9000, scoped, tag = 'internal scratch']
  %s0 = inlined_call_operand.hbm [shape: f32[16,512], index: 0, kind: input, shape index: {}]
  %s1 = inlined_call_operand.hbm [shape: f32[16,512], index: 1, kind: input, shape index: {}]
  %s2 = inlined_call_operand.hbm [shape: f32[1,512], index: 2, kind: input, shape index: {}]
  %s3 = inlined_call_operand.hbm [shape: f32[1,512], index: 3, kind: input, shape index: {}]
  %s4 = inlined_call_operand.vmem [shape: f32[16,2], index: 4, kind: output, shape index: {}]
  %s5 = sld [smem:[#allocation0]]
  $region65: #{tpu_custom_call.1} parent=0
    _
  %s7 = ssub.s32 1, %s5
  %s8 = scalar_select 0, %s7, %s5
  $region1: #{tpu_custom_call.1} parent=0
    #allocation2 [shape = 'u8[32768]{0}', space=vmem, size = 0x8000, scoped, tag = 'input window, operand 0']
    #allocation3 [shape = 's32[2]{0}', space=sflag, size = 0x8, scoped, tag = 'scoped memory for tpu_custom_call.1']
    #allocation4 [shape = 'u8[32768]{0}', space=vmem, size = 0x8000, scoped, tag = 'input window, operand 1']
    #allocation5 [shape = 's32[2]{0}', space=sflag, size = 0x8, scoped, tag = 'scoped memory for tpu_custom_call.1']
    #allocation6 [shape = 'u8[2048]{0}', space=vmem, size = 0x800, scoped, tag = 'input window, operand 2, single buffered']
    #allocation7 [shape = 'u8[2048]{0}', space=vmem, size = 0x800, scoped, tag = 'input window, operand 3, single buffered']
    #allocation8 [shape = 's32[1]{0}', space=sflag, size = 0x4, scoped, tag = 'scoped memory for tpu_custom_call.1']
    %9 = vsyncpa [#allocation3], 0
    %s10 = scalar_lea.sflag [#allocation3], 1
    %11 = vsyncpa %s10, 0
    %12 = vsyncpa [#allocation5], 0
    %s13 = scalar_lea.sflag [#allocation5], 1
    %14 = vsyncpa %s13, 0
    %15 = vsyncpa [#allocation8], 0
    loop: start=0, step=1, limit=4
    $region2: #{tpu_custom_call.1} parent=1 // loop_pre_header
      _
    $region3: #{tpu_custom_call.1} parent=1 // loop_header
      %s17 = sphi 0, %s21
      %p18 = scmp.ge.s32.totalorder %s17, 4
      %s27 = sphi 0, %s29
      %s30 = sphi 0, %s27
      %s31 = sphi 0, %s30
      %s47 = sphi 0, %s31
      %s53 = sphi 0, %s55
      %s56 = sphi 0, %s53
      %s57 = sphi 0, %s56
      %s73 = sphi 0, %s57
      %s77 = sphi 0, %s77
      %s79 = sphi 0, %s77
      %s80 = sphi 0, %s79
      %s94 = sphi 0, %s80
      %s98 = sphi 0, %s98
      %s100 = sphi 0, %s98
      %s101 = sphi 0, %s100
      %s115 = sphi 0, %s101
      %s121 = sphi 0, %s123
      %s124 = sphi 0, %s121
      %s125 = sphi 0, %s124
      %s141 = sphi 0, %s125
    $region4: #{tpu_custom_call.1} parent=1 // loop_header_branch
      %20 = sbr.rel (%p18) target = $region8
    $region5: #{tpu_custom_call.1} parent=1 // loop_body
      %s22 = ssub.s32 %s17, 1
      %s23 = ssub.s32 %s17, 2
      %s24 = sadd.s32 %s17, 1
      %s25 = ssub.s32 %s17, %s24
      %p26 = scmp.eq.s32.totalorder %s25, 0
      %s28 = sadd.s32 %s27, 1
      %s29 = scalar_select %p26, %s27, %s28
      %p32 = pneg %p26
      %p33 = scmp.eq.s32.totalorder %s17, 1
      %p34 = por %p32, %p33
      %p35 = scmp.ne.s32.totalorder %s27, %s30
      %p36 = scmp.eq.s32.totalorder %s17, 0
      %p37 = por %p35, %p36
      %p38 = scmp.ne.s32.totalorder %s27, %s30
      %p39 = scmp.eq.s32.totalorder %s22, 1
      %p40 = por %p38, %p39
      %p41 = scmp.ne.s32.totalorder %s30, %s31
      %p42 = scmp.eq.s32.totalorder %s22, 0
      %p43 = por %p41, %p42
      %p44 = scmp.ne.s32.totalorder %s30, %s31
      %p45 = scmp.eq.s32.totalorder %s23, 1
      %p46 = por %p44, %p45
      %p48 = scmp.ne.s32.totalorder %s31, %s47
      %p49 = scmp.eq.s32.totalorder %s23, 0
      %p50 = por %p48, %p49
      %s51 = ssub.s32 %s17, %s24
      %p52 = scmp.eq.s32.totalorder %s51, 0
      %s54 = sadd.s32 %s53, 1
      %s55 = scalar_select %p52, %s53, %s54
      %p58 = pneg %p52
      %p59 = scmp.eq.s32.totalorder %s17, 1
      %p60 = por %p58, %p59
      %p61 = scmp.ne.s32.totalorder %s53, %s56
      %p62 = scmp.eq.s32.totalorder %s17, 0
      %p63 = por %p61, %p62
      %p64 = scmp.ne.s32.totalorder %s53, %s56
      %p65 = scmp.eq.s32.totalorder %s22, 1
      %p66 = por %p64, %p65
      %p67 = scmp.ne.s32.totalorder %s56, %s57
      %p68 = scmp.eq.s32.totalorder %s22, 0
      %p69 = por %p67, %p68
      %p70 = scmp.ne.s32.totalorder %s56, %s57
      %p71 = scmp.eq.s32.totalorder %s23, 1
      %p72 = por %p70, %p71
      %p74 = scmp.ne.s32.totalorder %s57, %s73
      %p75 = scmp.eq.s32.totalorder %s23, 0
      %p76 = por %p74, %p75
      %s78 = sadd.s32 %s77, 1
      %p81 = scmp.eq.s32.totalorder %s17, 1
      %p82 = scmp.ne.s32.totalorder %s77, %s79
      %p83 = scmp.eq.s32.totalorder %s17, 0
      %p84 = por %p82, %p83
      %p85 = scmp.ne.s32.totalorder %s77, %s79
      %p86 = scmp.eq.s32.totalorder %s22, 1
      %p87 = por %p85, %p86
      %p88 = scmp.ne.s32.totalorder %s79, %s80
      %p89 = scmp.eq.s32.totalorder %s22, 0
      %p90 = por %p88, %p89
      %p91 = scmp.ne.s32.totalorder %s79, %s80
      %p92 = scmp.eq.s32.totalorder %s23, 1
      %p93 = por %p91, %p92
      %p95 = scmp.ne.s32.totalorder %s80, %s94
      %p96 = scmp.eq.s32.totalorder %s23, 0
      %p97 = por %p95, %p96
      %s99 = sadd.s32 %s98, 1
      %p102 = scmp.eq.s32.totalorder %s17, 1
      %p103 = scmp.ne.s32.totalorder %s98, %s100
      %p104 = scmp.eq.s32.totalorder %s17, 0
      %p105 = por %p103, %p104
      %p106 = scmp.ne.s32.totalorder %s98, %s100
      %p107 = scmp.eq.s32.totalorder %s22, 1
      %p108 = por %p106, %p107
      %p109 = scmp.ne.s32.totalorder %s100, %s101
      %p110 = scmp.eq.s32.totalorder %s22, 0
      %p111 = por %p109, %p110
      %p112 = scmp.ne.s32.totalorder %s100, %s101
      %p113 = scmp.eq.s32.totalorder %s23, 1
      %p114 = por %p112, %p113
      %p116 = scmp.ne.s32.totalorder %s101, %s115
      %p117 = scmp.eq.s32.totalorder %s23, 0
      %p118 = por %p116, %p117
      %s119 = ssub.s32 %s17, %s24
      %p120 = scmp.eq.s32.totalorder %s119, 0
      %s122 = sadd.s32 %s121, 1
      %s123 = scalar_select %p120, %s121, %s122
      %p126 = pneg %p120
      %p127 = scmp.eq.s32.totalorder %s17, 1
      %p128 = por %p126, %p127
      %p129 = scmp.ne.s32.totalorder %s121, %s124
      %p130 = scmp.eq.s32.totalorder %s17, 0
      %p131 = por %p129, %p130
      %p132 = scmp.ne.s32.totalorder %s121, %s124
      %p133 = scmp.eq.s32.totalorder %s22, 1
      %p134 = por %p132, %p133
      %p135 = scmp.ne.s32.totalorder %s124, %s125
      %p136 = scmp.eq.s32.totalorder %s22, 0
      %p137 = por %p135, %p136
      %p138 = scmp.ne.s32.totalorder %s124, %s125
      %p139 = scmp.eq.s32.totalorder %s23, 1
      %p140 = por %p138, %p139
      %p142 = scmp.ne.s32.totalorder %s125, %s141
      %p143 = scmp.eq.s32.totalorder %s23, 0
      %p144 = por %p142, %p143
      %p145 = scmp.le.s32.totalorder 1, %s17
      %p146 = scmp.lt.s32.totalorder %s17, 3
      %p147 = pnand %p145, %p146
      %p148 = pneg %p147
      // Predicated region
      $region9: #{tpu_custom_call.1} parent=5 // pred_check
        _
      $region10: #{tpu_custom_call.1} parent=5 // pred_check_branch
        %150 = sbr.rel (%p147) target = $region12
      $region11: #{tpu_custom_call.1} parent=5 // pred_region
        %s151 = ssub.s32 %s17, 1
        // Predicated region
        $region13: #{tpu_custom_call.1} parent=11 // pred_check
          %p152 = pneg %p90
        $region14: #{tpu_custom_call.1} parent=11 // pred_check_branch
          %154 = sbr.rel (%p152) target = $region16
        $region15: #{tpu_custom_call.1} parent=11 // pred_region
          %156 = vsyncadd [#allocation5], 0
          %s158 = sshll.u32 %s2, 4
          %s159 = int_to_ptr.hbm [resolvable:$true] %s158
          %s160 = sshll.u32 [#allocation6], 4
          %s161 = int_to_ptr.vmem [resolvable:$true] %s160
          %163 = dma.hbm_to_vmem [thread:$0]  %s159, 64, %s161, [#allocation5]
        $region16: #{tpu_custom_call.1} parent=11 // pred_fallthru
          _
        // Predicated region
        $region17: #{tpu_custom_call.1} parent=11 // pred_check
          %p164 = pneg %p111
        $region18: #{tpu_custom_call.1} parent=11 // pred_check_branch
          %166 = sbr.rel (%p164) target = $region20
        $region19: #{tpu_custom_call.1} parent=11 // pred_region
          %168 = vsyncadd [#allocation8], 0
          %s170 = sshll.u32 %s3, 4
          %s171 = int_to_ptr.hbm [resolvable:$true] %s170
          %s172 = sshll.u32 [#allocation7], 4
          %s173 = int_to_ptr.vmem [resolvable:$true] %s172
          %175 = dma.hbm_to_vmem [thread:$0]  %s171, 64, %s173, [#allocation8]
        $region20: #{tpu_custom_call.1} parent=11 // pred_fallthru
          _
      $region12: #{tpu_custom_call.1} parent=5 // pred_fallthru
        _
      %p176 = scmp.lt.s32.totalorder %s17, 2
      // Predicated region
      $region21: #{tpu_custom_call.1} parent=5 // pred_check
        %p177 = pneg %p176
      $region22: #{tpu_custom_call.1} parent=5 // pred_check_branch
        %179 = sbr.rel (%p177) target = $region24
      $region23: #{tpu_custom_call.1} parent=5 // pred_region
        // Predicated region
        $region25: #{tpu_custom_call.1} parent=23 // pred_check
          %p180 = pneg %p37
        $region26: #{tpu_custom_call.1} parent=23 // pred_check_branch
          %182 = sbr.rel (%p180) target = $region28
        $region27: #{tpu_custom_call.1} parent=23 // pred_region
          %s183 = sand.u32 %s27, 1
          %s184 = scalar_lea.sflag [#allocation3], %s183
          %s185 = sand.u32 %s27, 1
          %s186 = smul.addr %s185, 32
          %s187 = scalar_lea.vmem [#allocation2], %s186
          %189 = vsyncadd %s184, 0
          %s190 = smul.addr %s17, 4
          %s191 = smul.addr %s190, 8
          %s192 = scalar_lea.hbm %s0, %s191
          %s194 = sshll.u32 %s192, 4
          %s195 = int_to_ptr.hbm [resolvable:$true] %s194
          %s196 = sshll.u32 %s187, 4
          %s197 = int_to_ptr.vmem [resolvable:$true] %s196
          %199 = dma.hbm_to_vmem [thread:$0]  %s195, 512, %s197, %s184
        $region28: #{tpu_custom_call.1} parent=23 // pred_fallthru
          _
        // Predicated region
        $region29: #{tpu_custom_call.1} parent=23 // pred_check
          %p200 = pneg %p63
        $region30: #{tpu_custom_call.1} parent=23 // pred_check_branch
          %202 = sbr.rel (%p200) target = $region32
        $region31: #{tpu_custom_call.1} parent=23 // pred_region
          %s203 = sand.u32 %s17, 1
          %s204 = scalar_lea.sflag [#allocation5], %s203
          %s205 = sand.u32 %s53, 1
          %s206 = smul.addr %s205, 32
          %s207 = scalar_lea.vmem [#allocation4], %s206
          %209 = vsyncadd %s204, 0
          %s210 = smul.addr %s17, 4
          %s211 = smul.addr %s210, 8
          %s212 = scalar_lea.hbm %s1, %s211
          %s214 = sshll.u32 %s212, 4
          %s215 = int_to_ptr.hbm [resolvable:$true] %s214
          %s216 = sshll.u32 %s207, 4
          %s217 = int_to_ptr.vmem [resolvable:$true] %s216
          %219 = dma.hbm_to_vmem [thread:$0]  %s215, 512, %s217, %s204
        $region32: #{tpu_custom_call.1} parent=23 // pred_fallthru
          _
      $region24: #{tpu_custom_call.1} parent=5 // pred_fallthru
        _
      %p220 = scmp.le.s32.totalorder 1, %s17
      %p221 = scmp.lt.s32.totalorder %s17, 3
      %p222 = pnand %p220, %p221
      %p223 = pneg %p222
      // Predicated region
      $region33: #{tpu_custom_call.1} parent=5 // pred_check
        _
      $region34: #{tpu_custom_call.1} parent=5 // pred_check_branch
        %225 = sbr.rel (%p222) target = $region36
      $region35: #{tpu_custom_call.1} parent=5 // pred_region
        %s226 = ssub.s32 %s17, 1
        %s227 = sand.u32 %s30, 1
        %s228 = scalar_lea.sflag [#allocation3], %s227
        %s229 = sand.u32 %s30, 1
        %s230 = smul.addr %s229, 32
        %s231 = scalar_lea.vmem [#allocation2], %s230
        // Predicated region
        $region37: #{tpu_custom_call.1} parent=35 // pred_check
          %p232 = pneg %p43
        $region38: #{tpu_custom_call.1} parent=35 // pred_check_branch
          %234 = sbr.rel (%p232) target = $region40
        $region39: #{tpu_custom_call.1} parent=35 // pred_region
          %236 = dma.done %s228, 512
        $region40: #{tpu_custom_call.1} parent=35 // pred_fallthru
          _
        %s237 = sand.u32 %s22, 1
        %s238 = scalar_lea.sflag [#allocation5], %s237
        %s239 = sand.u32 %s56, 1
        %s240 = smul.addr %s239, 32
        %s241 = scalar_lea.vmem [#allocation4], %s240
        // Predicated region
        $region41: #{tpu_custom_call.1} parent=35 // pred_check
          %p242 = pneg %p69
        $region42: #{tpu_custom_call.1} parent=35 // pred_check_branch
          %244 = sbr.rel (%p242) target = $region44
        $region43: #{tpu_custom_call.1} parent=35 // pred_region
          %246 = dma.done %s238, 512
        $region44: #{tpu_custom_call.1} parent=35 // pred_fallthru
          _
        // Predicated region
        $region45: #{tpu_custom_call.1} parent=35 // pred_check
          %p247 = pneg %p90
        $region46: #{tpu_custom_call.1} parent=35 // pred_check_branch
          %249 = sbr.rel (%p247) target = $region48
        $region47: #{tpu_custom_call.1} parent=35 // pred_region
          %251 = dma.done [#allocation5], 64
        $region48: #{tpu_custom_call.1} parent=35 // pred_fallthru
          _
        // Predicated region
        $region49: #{tpu_custom_call.1} parent=35 // pred_check
          %p252 = pneg %p111
        $region50: #{tpu_custom_call.1} parent=35 // pred_check_branch
          %254 = sbr.rel (%p252) target = $region52
        $region51: #{tpu_custom_call.1} parent=35 // pred_region
          %256 = dma.done [#allocation8], 64
        $region52: #{tpu_custom_call.1} parent=35 // pred_fallthru
          _
        %s257 = sand.u32 %s30, 1
        %s258 = scalar_lea.sflag [#allocation3], %s257
        %s259 = sand.u32 %s30, 1
        %s260 = smul.addr %s259, 32
        %s261 = scalar_lea.vmem [#allocation2], %s260
        %p262 = pneg %p43
        %p263 = pneg %p40
        %s264 = sand.u32 %s22, 1
        %s265 = scalar_lea.sflag [#allocation5], %s264
        %s266 = sand.u32 %s56, 1
        %s267 = smul.addr %s266, 32
        %s268 = scalar_lea.vmem [#allocation4], %s267
        %p269 = pneg %p69
        %p270 = pneg %p66
        %p271 = pneg %p90
        %p272 = pneg %p87
        %p273 = pneg %p111
        %p274 = pneg %p108
        %p275 = pneg %p137
        %p276 = pneg %p134
        %p277 = scmp.lt.s32.totalorder %s22, 1
        %s278 = scalar_select %p277, %s22, 1
        %s279 = smul.addr %s278, 8
        %s280 = scalar_lea.vmem %s4, %s279
        %p281 = scmp.lt.s32.totalorder %s22, 1
        %s282 = scalar_select %p281, %s22, 1
        %s283 = smul.addr %s282, 8
        %s284 = scalar_lea.vmem %s4, %s283
        %v285 = vld [vmem:[%s231] sm:$0xff]
        %v286 = vld [vmem:[%s241] sm:$0xff]
        %v287 = vld [vmem:[#allocation6] sm:$0x1]
        %v288 = vld [vmem:[#allocation7] sm:$0x1]
        %v290 = vperm.slane %v287, 0
        %v292 = vmul.f32 %v285, %v290
        %v294 = vperm.slane %v288, 0
        %v296 = vmul.f32 %v286, %v294
        %v297 = vsub.f32 %v292, %v296
        %v298 = vadd.f32 %v297, 0.0
        %v299 = vmul.f32 %v285, %v294
        %v300 = vmul.f32 %v286, %v290
        %v301 = vadd.f32 %v299, %v300
        %v302 = vadd.f32 %v301, 0.0
        %v303 = vld [vmem:[%s231 + $0x8] sm:$0xff]
        %v304 = vld [vmem:[%s241 + $0x8] sm:$0xff]
        %v305 = vld [vmem:[#allocation6 + $0x1] sm:$0x1]
        %v306 = vld [vmem:[#allocation7 + $0x1] sm:$0x1]
        %v308 = vperm.slane %v305, 0
        %v310 = vmul.f32 %v303, %v308
        %v312 = vperm.slane %v306, 0
        %v314 = vmul.f32 %v304, %v312
        %v315 = vsub.f32 %v310, %v314
        %v316 = vadd.f32 %v298, %v315
        %v317 = vmul.f32 %v303, %v312
        %v318 = vmul.f32 %v304, %v308
        %v319 = vadd.f32 %v317, %v318
        %v320 = vadd.f32 %v302, %v319
        %v321 = vld [vmem:[%s231 + $0x10] sm:$0xff]
        %v322 = vld [vmem:[%s241 + $0x10] sm:$0xff]
        %v323 = vld [vmem:[#allocation6 + $0x2] sm:$0x1]
        %v324 = vld [vmem:[#allocation7 + $0x2] sm:$0x1]
        %v326 = vperm.slane %v323, 0
        %v328 = vmul.f32 %v321, %v326
        %v330 = vperm.slane %v324, 0
        %v332 = vmul.f32 %v322, %v330
        %v333 = vsub.f32 %v328, %v332
        %v334 = vadd.f32 %v316, %v333
        %v335 = vmul.f32 %v321, %v330
        %v336 = vmul.f32 %v322, %v326
        %v337 = vadd.f32 %v335, %v336
        %v338 = vadd.f32 %v320, %v337
        %v339 = vld [vmem:[%s231 + $0x18] sm:$0xff]
        %v340 = vld [vmem:[%s241 + $0x18] sm:$0xff]
        %v341 = vld [vmem:[#allocation6 + $0x3] sm:$0x1]
        %v342 = vld [vmem:[#allocation7 + $0x3] sm:$0x1]
        %v344 = vperm.slane %v341, 0
        %v346 = vmul.f32 %v339, %v344
        %v348 = vperm.slane %v342, 0
        %v350 = vmul.f32 %v340, %v348
        %v351 = vsub.f32 %v346, %v350
        %v352 = vadd.f32 %v334, %v351
        %v353 = vmul.f32 %v339, %v348
        %v354 = vmul.f32 %v340, %v344
        %v355 = vadd.f32 %v353, %v354
        %v356 = vadd.f32 %v338, %v355
        %357 = vadd.xlane.f32.xlu0 %v352
        %v358 = vpop.xlane.xlu0 %357
        %359 = vadd.xlane.f32.xlu0 %v356
        %v360 = vpop.xlane.xlu0 %359
        %vm361 = vcmask 7168
        %362 = vst.msk [vmem:[%s284] sm:$0xff] %vm361, %v358
        %vm363 = vcmask 15368
        %364 = vst.msk [vmem:[%s284] sm:$0xff] %vm363, %v360
        %p365 = scmp.lt.s32.totalorder %s22, 1
        %s366 = scalar_select %p365, %s22, 1
        %s367 = smul.addr %s366, 8
        %s368 = scalar_lea.vmem %s4, %s367
        // Predicated region
        $region53: #{tpu_custom_call.1} parent=35 // pred_check
          %p369 = pneg %p134
        $region54: #{tpu_custom_call.1} parent=35 // pred_check_branch
          %371 = sbr.rel (%p369) target = $region56
        $region55: #{tpu_custom_call.1} parent=35 // pred_region
          _
        $region56: #{tpu_custom_call.1} parent=35 // pred_fallthru
          _
      $region36: #{tpu_custom_call.1} parent=5 // pred_fallthru
        _
      %p372 = scmp.le.s32.totalorder 2, %s17
      // Predicated region
      $region57: #{tpu_custom_call.1} parent=5 // pred_check
        %p373 = pneg %p372
      $region58: #{tpu_custom_call.1} parent=5 // pred_check_branch
        %375 = sbr.rel (%p373) target = $region60
      $region59: #{tpu_custom_call.1} parent=5 // pred_region
        %s376 = ssub.s32 %s17, 2
        // Predicated region
        $region61: #{tpu_custom_call.1} parent=59 // pred_check
          %p377 = pneg %p140
        $region62: #{tpu_custom_call.1} parent=59 // pred_check_branch
          %379 = sbr.rel (%p377) target = $region64
        $region63: #{tpu_custom_call.1} parent=59 // pred_region
          %p380 = scmp.lt.s32.totalorder %s23, 1
          %s381 = scalar_select %p380, %s23, 1
          %s382 = smul.addr %s381, 8
          %s383 = scalar_lea.vmem %s4, %s382
        $region64: #{tpu_custom_call.1} parent=59 // pred_fallthru
          _
      $region60: #{tpu_custom_call.1} parent=5 // pred_fallthru
        _
    $region6: #{tpu_custom_call.1} parent=1 // loop_footer
      %s21 = sadd.s32 1, %s17
    $region7: #{tpu_custom_call.1} parent=1 // loop_footer_branch
      %16 = sbr.rel target = $region3
    $region8: #{tpu_custom_call.1} parent=1 // loop_exit
      _
    %384 = vsyncpa [#allocation3], 1
    %s385 = scalar_lea.sflag [#allocation3], 1
    %386 = vsyncpa %s385, 1
    %387 = vsyncpa [#allocation5], 1
    %s388 = scalar_lea.sflag [#allocation5], 1
    %389 = vsyncpa %s388, 1
    %390 = vsyncpa [#allocation8], 1

</llo_original>
